<compile_context>
chip_gen: v6e
topology: v6e:2x2x1
jax: 0.10.0
libtpu: 0.0.40
codegen_flags: <defaults>
</compile_context>

<pallas_src>
import functools

import jax
import jax.numpy as jnp
from jax import lax
from jax.experimental import pallas as pl
from jax.experimental.pallas import tpu as pltpu


def _round_up(n: int, m: int) -> int:
    return ((n + m - 1) // m) * m


def rnn_seq_kernel(x_ref, h0_ref, wi_ref, bi_ref, wh_ref, bh_ref,
                   out_ref, h_scratch, it_scratch):
    """One grid step == TT timesteps. Weights stay VMEM-resident across steps."""
    t = pl.program_id(0)

    @pl.when(t == 0)
    def _():
        h_scratch[...] = h0_ref[...].astype(jnp.float32)

    TT, B, F = x_ref.shape          # static Python ints
    H = wh_ref.shape[1]

    # ---- Hoisted input projection for the whole TT-step block -------------
    # No dependence on h, so it does not belong on the serial recurrence.
    # One large-M matmul: (TT*B, F) @ (F, H).  bi folded in here.
    x_blk = x_ref[...].reshape(TT * B, F)
    it_blk = jnp.dot(x_blk, wi_ref[...], preferred_element_type=jnp.float32)
    it_blk = it_blk + bi_ref[...]                    # broadcast (1, H)
    it_scratch[...] = it_blk.reshape(TT, B, H)

    wh = wh_ref[...]
    bh = bh_ref[...]

    # ---- Serial recurrence over the TT steps (unrolled, h carried in vregs)
    def step(s, h):
        hwh = jnp.dot(h.astype(wh.dtype), wh,
                      preferred_element_type=jnp.float32)
        ht = hwh + bh
        act = jnp.maximum(it_scratch[s] + ht, 0.0)
        out = jnp.maximum(act + ht, 0.0)
        out_ref[s] = out.astype(out_ref.dtype)
        return out

    h_scratch[...] = lax.fori_loop(0, TT, step, h_scratch[...], unroll=True)


@functools.partial(jax.jit, static_argnames=("tt", "use_bf16"))
def custom_rnn_sequence(x_seq, h0, wi, bi, wh, bh, *, tt=8, use_bf16=False):
    """Run the RNN cell over a whole sequence in one kernel launch.

    x_seq: (T, B, input_size)
    h0:    (B, hidden_size)
    wi:    (hidden_size, input_size)   (PyTorch nn.Linear layout)
    bi:    (hidden_size,)
    wh:    (hidden_size, hidden_size)
    bh:    (hidden_size,)
    Returns: (T, B, hidden_size) — hidden state after every step.
    """
    T, B, F = x_seq.shape
    H = wi.shape[0]

    # Pad to TPU-friendly shapes: batch -> 8 sublanes, features -> 128 lanes,
    # time -> multiple of the per-grid-step block TT.
    tt = max(1, min(tt, T))
    T_pad = _round_up(T, tt)
    B_pad = _round_up(B, 8)
    F_pad = _round_up(F, 128)
    H_pad = _round_up(H, 128)

    mm_dtype = jnp.bfloat16 if use_bf16 else x_seq.dtype

    x_p = jnp.pad(
        x_seq, ((0, T_pad - T), (0, B_pad - B), (0, F_pad - F))
    ).astype(mm_dtype)
    h_p = jnp.pad(h0, ((0, B_pad - B), (0, H_pad - H))).astype(jnp.float32)
    # Pre-transpose ONCE: PyTorch (out, in) -> (in, out) for MXU-native dots.
    wi_t = jnp.pad(wi.T, ((0, F_pad - F), (0, H_pad - H))).astype(mm_dtype)
    wh_t = jnp.pad(wh.T, ((0, H_pad - H), (0, H_pad - H))).astype(mm_dtype)
    bi_p = jnp.pad(bi, ((0, H_pad - H),)).reshape(1, H_pad).astype(jnp.float32)
    bh_p = jnp.pad(bh, ((0, H_pad - H),)).reshape(1, H_pad).astype(jnp.float32)

    out = pl.pallas_call(
        rnn_seq_kernel,
        out_shape=jax.ShapeDtypeStruct((T_pad, B_pad, H_pad), x_seq.dtype),
        grid_spec=pltpu.PrefetchScalarGridSpec(
            num_scalar_prefetch=0,
            grid=(T_pad // tt,),
            in_specs=[
                # x: TT timesteps per grid step.
                pl.BlockSpec((tt, B_pad, F_pad), lambda t: (t, 0, 0)),
                # h0 / weights / biases: constant index_map => VMEM-resident.
                pl.BlockSpec((B_pad, H_pad), lambda t: (0, 0)),
                pl.BlockSpec((F_pad, H_pad), lambda t: (0, 0)),
                pl.BlockSpec((1, H_pad), lambda t: (0, 0)),
                pl.BlockSpec((H_pad, H_pad), lambda t: (0, 0)),
                pl.BlockSpec((1, H_pad), lambda t: (0, 0)),
            ],
            out_specs=pl.BlockSpec((tt, B_pad, H_pad), lambda t: (t, 0, 0)),
            scratch_shapes=[
                pltpu.VMEM((B_pad, H_pad), jnp.float32),        # h carry
                pltpu.VMEM((tt, B_pad, H_pad), jnp.float32),    # hoisted x@Wi+bi
            ],
        ),
        compiler_params=pltpu.CompilerParams(
            # Timestep-block axis is a sequential carry.
            dimension_semantics=("arbitrary",),
            vmem_limit_bytes=64 << 20,
        ),
    )(x_p, h_p, wi_t, bi_p, wh_t, bh_p)

    return out[:T, :B, :H]


def custom_rnn_cell(x, hidden, wi, bi, wh, bh):
    """Single-step forward (matches CustomRNNCell.forward)."""
    return custom_rnn_sequence(x[None], hidden, wi, bi, wh, bh)[0]


# --- pure-JAX references -----------------------------------------------------

def reference_cell(x, hidden, wi, bi, wh, bh):
    it = x @ wi.T + bi
    ht = hidden @ wh.T + bh
    act = jnp.maximum(it + ht, 0.0)
    return jnp.maximum(act + ht, 0.0)


def reference_sequence(x_seq, h0, wi, bi, wh, bh):
    def step(h, x):
        out = reference_cell(x, h, wi, bi, wh, bh)
        return out, out
    _, outs = lax.scan(step, h0, x_seq)
    return outs


if __name__ == "__main__":
    # seq_len chosen NOT a multiple of TT=8 so both the cross-grid-step carry
    # and the time-padding path are exercised.
    seq_len = 12
    batch = 8
    input_size = 16
    hidden_size = 32

    key = jax.random.PRNGKey(0)
    kx, kh, kwi, kbi, kwh, kbh = jax.random.split(key, 6)

    x_seq = jax.random.normal(kx, (seq_len, batch, input_size), dtype=jnp.float32)
    hidden = jax.random.normal(kh, (batch, hidden_size), dtype=jnp.float32)

    # Deterministic parameter init mimicking nn.Linear's U(-1/sqrt(fan_in), +)
    bound_i = 1.0 / (input_size ** 0.5)
    bound_h = 1.0 / (hidden_size ** 0.5)
    wi = jax.random.uniform(kwi, (hidden_size, input_size),
                            minval=-bound_i, maxval=bound_i, dtype=jnp.float32)
    bi = jax.random.uniform(kbi, (hidden_size,),
                            minval=-bound_i, maxval=bound_i, dtype=jnp.float32)
    wh = jax.random.uniform(kwh, (hidden_size, hidden_size),
                            minval=-bound_h, maxval=bound_h, dtype=jnp.float32)
    bh = jax.random.uniform(kbh, (hidden_size,),
                            minval=-bound_h, maxval=bound_h, dtype=jnp.float32)

    # Fused multi-step kernel (one launch for the whole sequence).
    out_seq = custom_rnn_sequence(x_seq, hidden, wi, bi, wh, bh)
    jax.block_until_ready(out_seq)
    ref_seq = reference_sequence(x_seq, hidden, wi, bi, wh, bh)
    assert out_seq.shape == (seq_len, batch, hidden_size)
    assert jnp.allclose(out_seq, ref_seq, atol=1e-5, rtol=1e-5)

    # Single-step cell (matches the PyTorch module's forward exactly).
    out_cell = custom_rnn_cell(x_seq[0], hidden, wi, bi, wh, bh)
    jax.block_until_ready(out_cell)
    ref_cell = reference_cell(x_seq[0], hidden, wi, bi, wh, bh)
    assert out_cell.shape == (batch, hidden_size)
    assert jnp.allclose(out_cell, ref_cell, atol=1e-5, rtol=1e-5)

    print("KERNEL_OK")
</pallas_src>

<mosaic_0001>
module attributes {stable_mosaic.version = 11 : i64} {
  func.func @rnn_seq_kernel(%arg0: i32, %arg1: memref<8x8x128xf32, #tpu.memory_space<vmem>>, %arg2: memref<8x128xf32, #tpu.memory_space<vmem>>, %arg3: memref<128x128xf32, #tpu.memory_space<vmem>>, %arg4: memref<1x128xf32, #tpu.memory_space<vmem>>, %arg5: memref<128x128xf32, #tpu.memory_space<vmem>>, %arg6: memref<1x128xf32, #tpu.memory_space<vmem>>, %arg7: memref<8x8x128xf32, #tpu.memory_space<vmem>>, %arg8: memref<8x128xf32, #tpu.memory_space<vmem>>, %arg9: memref<8x8x128xf32, #tpu.memory_space<vmem>>) attributes {dimension_semantics = [#tpu.dimension_semantics<arbitrary>], iteration_bounds = array<i64: 2>, scalar_prefetch = 0 : i64, scratch_operands = 2 : i64, tpu.core_type = #tpu.core_type<tc>, window_params = [{transform_indices = @transform_0, window_bounds = array<i64: 8, 8, 128>}, {pipeline_mode = #tpu.pipeline_mode<synchronous>, transform_indices = @transform_1, window_bounds = array<i64: 8, 128>}, {pipeline_mode = #tpu.pipeline_mode<synchronous>, transform_indices = @transform_2, window_bounds = array<i64: 128, 128>}, {pipeline_mode = #tpu.pipeline_mode<synchronous>, transform_indices = @transform_3, window_bounds = array<i64: 1, 128>}, {pipeline_mode = #tpu.pipeline_mode<synchronous>, transform_indices = @transform_4, window_bounds = array<i64: 128, 128>}, {pipeline_mode = #tpu.pipeline_mode<synchronous>, transform_indices = @transform_5, window_bounds = array<i64: 1, 128>}, {transform_indices = @transform_6, window_bounds = array<i64: 8, 8, 128>}]} {
    %c0_i32 = arith.constant 0 : i32
    %0 = arith.cmpi eq, %arg0, %c0_i32 : i32
    %1 = arith.extui %0 : i1 to i32
    %c0_i32_0 = arith.constant 0 : i32
    %2 = arith.cmpi ne, %1, %c0_i32_0 : i32
    scf.if %2 {
      %c0_75 = arith.constant 0 : index
      %c0_76 = arith.constant 0 : index
      %144 = vector.load %arg2[%c0_75, %c0_76] : memref<8x128xf32, #tpu.memory_space<vmem>>, vector<8x128xf32>
      %c0_77 = arith.constant 0 : index
      %c0_78 = arith.constant 0 : index
      %145 = vector.load %arg8[%c0_77, %c0_78] : memref<8x128xf32, #tpu.memory_space<vmem>>, vector<8x128xf32>
      tpu.vector_store %arg8[%c0_77, %c0_78], %144 {strides = array<i32>} : memref<8x128xf32, #tpu.memory_space<vmem>>, vector<8x128xf32>,
    } else {
    }
    %c0 = arith.constant 0 : index
    %c0_1 = arith.constant 0 : index
    %c0_2 = arith.constant 0 : index
    %3 = vector.load %arg1[%c0, %c0_1, %c0_2] : memref<8x8x128xf32, #tpu.memory_space<vmem>>, vector<8x8x128xf32>
    %4 = vector.shape_cast %3 : vector<8x8x128xf32> to vector<64x128xf32>
    %c0_3 = arith.constant 0 : index
    %c0_4 = arith.constant 0 : index
    %5 = vector.load %arg3[%c0_3, %c0_4] : memref<128x128xf32, #tpu.memory_space<vmem>>, vector<128x128xf32>
    %cst = arith.constant dense<0.000000e+00> : vector<64x128xf32>
    %6 = tpu.matmul %4, %5, %cst {dimension_numbers = #tpu.dot_dimension_numbers<[1], [0], [0], [1], [0, 0, 1, 1], [], []>} : vector<64x128xf32>, vector<128x128xf32>, vector<64x128xf32> -> vector<64x128xf32>
    %c0_5 = arith.constant 0 : index
    %c0_6 = arith.constant 0 : index
    %7 = vector.load %arg4[%c0_5, %c0_6] : memref<1x128xf32, #tpu.memory_space<vmem>>, vector<1x128xf32>
    %8 = vector.broadcast %7 : vector<1x128xf32> to vector<64x128xf32>
    %9 = arith.addf %6, %8 : vector<64x128xf32>
    %10 = vector.shape_cast %9 : vector<64x128xf32> to vector<8x8x128xf32>
    %c0_7 = arith.constant 0 : index
    %c0_8 = arith.constant 0 : index
    %c0_9 = arith.constant 0 : index
    %11 = vector.load %arg9[%c0_7, %c0_8, %c0_9] : memref<8x8x128xf32, #tpu.memory_space<vmem>>, vector<8x8x128xf32>
    tpu.vector_store %arg9[%c0_7, %c0_8, %c0_9], %10 {strides = array<i32>} : memref<8x8x128xf32, #tpu.memory_space<vmem>>, vector<8x8x128xf32>,
    %c0_10 = arith.constant 0 : index
    %c0_11 = arith.constant 0 : index
    %12 = vector.load %arg5[%c0_10, %c0_11] : memref<128x128xf32, #tpu.memory_space<vmem>>, vector<128x128xf32>
    %c0_12 = arith.constant 0 : index
    %c0_13 = arith.constant 0 : index
    %13 = vector.load %arg6[%c0_12, %c0_13] : memref<1x128xf32, #tpu.memory_space<vmem>>, vector<1x128xf32>
    %c0_14 = arith.constant 0 : index
    %c0_15 = arith.constant 0 : index
    %14 = vector.load %arg8[%c0_14, %c0_15] : memref<8x128xf32, #tpu.memory_space<vmem>>, vector<8x128xf32>
    %c0_i32_16 = arith.constant 0 : i32
    %cst_17 = arith.constant dense<0.000000e+00> : vector<8x128xf32>
    %15 = tpu.matmul %14, %12, %cst_17 {dimension_numbers = #tpu.dot_dimension_numbers<[1], [0], [0], [1], [0, 0, 1, 1], [], []>} : vector<8x128xf32>, vector<128x128xf32>, vector<8x128xf32> -> vector<8x128xf32>
    %16 = vector.broadcast %13 : vector<1x128xf32> to vector<8x128xf32>
    %17 = arith.addf %15, %16 : vector<8x128xf32>
    %18 = arith.index_cast %c0_i32_16 : i32 to index
    %c0_18 = arith.constant 0 : index
    %c0_19 = arith.constant 0 : index
    %19 = vector.load %arg9[%18, %c0_18, %c0_19] : memref<8x8x128xf32, #tpu.memory_space<vmem>>, vector<1x8x128xf32>
    %20 = vector.shape_cast %19 : vector<1x8x128xf32> to vector<8x128xf32>
    %21 = arith.addf %20, %17 : vector<8x128xf32>
    %cst_20 = arith.constant 0.000000e+00 : f32
    %22 = vector.broadcast %cst_20 : f32 to vector<8x128xf32>
    %23 = arith.maximumf %21, %22 : vector<8x128xf32>
    %24 = arith.addf %23, %17 : vector<8x128xf32>
    %cst_21 = arith.constant 0.000000e+00 : f32
    %25 = vector.broadcast %cst_21 : f32 to vector<8x128xf32>
    %26 = arith.maximumf %24, %25 : vector<8x128xf32>
    %27 = arith.index_cast %c0_i32_16 : i32 to index
    %c0_22 = arith.constant 0 : index
    %c0_23 = arith.constant 0 : index
    %28 = vector.load %arg7[%27, %c0_22, %c0_23] : memref<8x8x128xf32, #tpu.memory_space<vmem>>, vector<1x8x128xf32>
    %29 = vector.shape_cast %28 : vector<1x8x128xf32> to vector<8x128xf32>
    %30 = vector.shape_cast %26 : vector<8x128xf32> to vector<1x8x128xf32>
    tpu.vector_store %arg7[%27, %c0_22, %c0_23], %30 {strides = array<i32>} : memref<8x8x128xf32, #tpu.memory_space<vmem>>, vector<1x8x128xf32>,
    %c1_i32 = arith.constant 1 : i32
    %cst_24 = arith.constant dense<0.000000e+00> : vector<8x128xf32>
    %31 = tpu.matmul %26, %12, %cst_24 {dimension_numbers = #tpu.dot_dimension_numbers<[1], [0], [0], [1], [0, 0, 1, 1], [], []>} : vector<8x128xf32>, vector<128x128xf32>, vector<8x128xf32> -> vector<8x128xf32>
    %32 = vector.broadcast %13 : vector<1x128xf32> to vector<8x128xf32>
    %33 = arith.addf %31, %32 : vector<8x128xf32>
    %34 = arith.index_cast %c1_i32 : i32 to index
    %c0_25 = arith.constant 0 : index
    %c0_26 = arith.constant 0 : index
    %35 = vector.load %arg9[%34, %c0_25, %c0_26] : memref<8x8x128xf32, #tpu.memory_space<vmem>>, vector<1x8x128xf32>
    %36 = vector.shape_cast %35 : vector<1x8x128xf32> to vector<8x128xf32>
    %37 = arith.addf %36, %33 : vector<8x128xf32>
    %cst_27 = arith.constant 0.000000e+00 : f32
    %38 = vector.broadcast %cst_27 : f32 to vector<8x128xf32>
    %39 = arith.maximumf %37, %38 : vector<8x128xf32>
    %40 = arith.addf %39, %33 : vector<8x128xf32>
    %cst_28 = arith.constant 0.000000e+00 : f32
    %41 = vector.broadcast %cst_28 : f32 to vector<8x128xf32>
    %42 = arith.maximumf %40, %41 : vector<8x128xf32>
    %43 = arith.index_cast %c1_i32 : i32 to index
    %c0_29 = arith.constant 0 : index
    %c0_30 = arith.constant 0 : index
    %44 = vector.load %arg7[%43, %c0_29, %c0_30] : memref<8x8x128xf32, #tpu.memory_space<vmem>>, vector<1x8x128xf32>
    %45 = vector.shape_cast %44 : vector<1x8x128xf32> to vector<8x128xf32>
    %46 = vector.shape_cast %42 : vector<8x128xf32> to vector<1x8x128xf32>
    tpu.vector_store %arg7[%43, %c0_29, %c0_30], %46 {strides = array<i32>} : memref<8x8x128xf32, #tpu.memory_space<vmem>>, vector<1x8x128xf32>,
    %c2_i32 = arith.constant 2 : i32
    %cst_31 = arith.constant dense<0.000000e+00> : vector<8x128xf32>
    %47 = tpu.matmul %42, %12, %cst_31 {dimension_numbers = #tpu.dot_dimension_numbers<[1], [0], [0], [1], [0, 0, 1, 1], [], []>} : vector<8x128xf32>, vector<128x128xf32>, vector<8x128xf32> -> vector<8x128xf32>
    %48 = vector.broadcast %13 : vector<1x128xf32> to vector<8x128xf32>
    %49 = arith.addf %47, %48 : vector<8x128xf32>
    %50 = arith.index_cast %c2_i32 : i32 to index
    %c0_32 = arith.constant 0 : index
    %c0_33 = arith.constant 0 : index
    %51 = vector.load %arg9[%50, %c0_32, %c0_33] : memref<8x8x128xf32, #tpu.memory_space<vmem>>, vector<1x8x128xf32>
    %52 = vector.shape_cast %51 : vector<1x8x128xf32> to vector<8x128xf32>
    %53 = arith.addf %52, %49 : vector<8x128xf32>
    %cst_34 = arith.constant 0.000000e+00 : f32
    %54 = vector.broadcast %cst_34 : f32 to vector<8x128xf32>
    %55 = arith.maximumf %53, %54 : vector<8x128xf32>
    %56 = arith.addf %55, %49 : vector<8x128xf32>
    %cst_35 = arith.constant 0.000000e+00 : f32
    %57 = vector.broadcast %cst_35 : f32 to vector<8x128xf32>
    %58 = arith.maximumf %56, %57 : vector<8x128xf32>
    %59 = arith.index_cast %c2_i32 : i32 to index
    %c0_36 = arith.constant 0 : index
    %c0_37 = arith.constant 0 : index
    %60 = vector.load %arg7[%59, %c0_36, %c0_37] : memref<8x8x128xf32, #tpu.memory_space<vmem>>, vector<1x8x128xf32>
    %61 = vector.shape_cast %60 : vector<1x8x128xf32> to vector<8x128xf32>
    %62 = vector.shape_cast %58 : vector<8x128xf32> to vector<1x8x128xf32>
    tpu.vector_store %arg7[%59, %c0_36, %c0_37], %62 {strides = array<i32>} : memref<8x8x128xf32, #tpu.memory_space<vmem>>, vector<1x8x128xf32>,
    %c3_i32 = arith.constant 3 : i32
    %cst_38 = arith.constant dense<0.000000e+00> : vector<8x128xf32>
    %63 = tpu.matmul %58, %12, %cst_38 {dimension_numbers = #tpu.dot_dimension_numbers<[1], [0], [0], [1], [0, 0, 1, 1], [], []>} : vector<8x128xf32>, vector<128x128xf32>, vector<8x128xf32> -> vector<8x128xf32>
    %64 = vector.broadcast %13 : vector<1x128xf32> to vector<8x128xf32>
    %65 = arith.addf %63, %64 : vector<8x128xf32>
    %66 = arith.index_cast %c3_i32 : i32 to index
    %c0_39 = arith.constant 0 : index
    %c0_40 = arith.constant 0 : index
    %67 = vector.load %arg9[%66, %c0_39, %c0_40] : memref<8x8x128xf32, #tpu.memory_space<vmem>>, vector<1x8x128xf32>
    %68 = vector.shape_cast %67 : vector<1x8x128xf32> to vector<8x128xf32>
    %69 = arith.addf %68, %65 : vector<8x128xf32>
    %cst_41 = arith.constant 0.000000e+00 : f32
    %70 = vector.broadcast %cst_41 : f32 to vector<8x128xf32>
    %71 = arith.maximumf %69, %70 : vector<8x128xf32>
    %72 = arith.addf %71, %65 : vector<8x128xf32>
    %cst_42 = arith.constant 0.000000e+00 : f32
    %73 = vector.broadcast %cst_42 : f32 to vector<8x128xf32>
    %74 = arith.maximumf %72, %73 : vector<8x128xf32>
    %75 = arith.index_cast %c3_i32 : i32 to index
    %c0_43 = arith.constant 0 : index
    %c0_44 = arith.constant 0 : index
    %76 = vector.load %arg7[%75, %c0_43, %c0_44] : memref<8x8x128xf32, #tpu.memory_space<vmem>>, vector<1x8x128xf32>
    %77 = vector.shape_cast %76 : vector<1x8x128xf32> to vector<8x128xf32>
    %78 = vector.shape_cast %74 : vector<8x128xf32> to vector<1x8x128xf32>
    tpu.vector_store %arg7[%75, %c0_43, %c0_44], %78 {strides = array<i32>} : memref<8x8x128xf32, #tpu.memory_space<vmem>>, vector<1x8x128xf32>,
    %c4_i32 = arith.constant 4 : i32
    %cst_45 = arith.constant dense<0.000000e+00> : vector<8x128xf32>
    %79 = tpu.matmul %74, %12, %cst_45 {dimension_numbers = #tpu.dot_dimension_numbers<[1], [0], [0], [1], [0, 0, 1, 1], [], []>} : vector<8x128xf32>, vector<128x128xf32>, vector<8x128xf32> -> vector<8x128xf32>
    %80 = vector.broadcast %13 : vector<1x128xf32> to vector<8x128xf32>
    %81 = arith.addf %79, %80 : vector<8x128xf32>
    %82 = arith.index_cast %c4_i32 : i32 to index
    %c0_46 = arith.constant 0 : index
    %c0_47 = arith.constant 0 : index
    %83 = vector.load %arg9[%82, %c0_46, %c0_47] : memref<8x8x128xf32, #tpu.memory_space<vmem>>, vector<1x8x128xf32>
    %84 = vector.shape_cast %83 : vector<1x8x128xf32> to vector<8x128xf32>
    %85 = arith.addf %84, %81 : vector<8x128xf32>
    %cst_48 = arith.constant 0.000000e+00 : f32
    %86 = vector.broadcast %cst_48 : f32 to vector<8x128xf32>
    %87 = arith.maximumf %85, %86 : vector<8x128xf32>
    %88 = arith.addf %87, %81 : vector<8x128xf32>
    %cst_49 = arith.constant 0.000000e+00 : f32
    %89 = vector.broadcast %cst_49 : f32 to vector<8x128xf32>
    %90 = arith.maximumf %88, %89 : vector<8x128xf32>
    %91 = arith.index_cast %c4_i32 : i32 to index
    %c0_50 = arith.constant 0 : index
    %c0_51 = arith.constant 0 : index
    %92 = vector.load %arg7[%91, %c0_50, %c0_51] : memref<8x8x128xf32, #tpu.memory_space<vmem>>, vector<1x8x128xf32>
    %93 = vector.shape_cast %92 : vector<1x8x128xf32> to vector<8x128xf32>
    %94 = vector.shape_cast %90 : vector<8x128xf32> to vector<1x8x128xf32>
    tpu.vector_store %arg7[%91, %c0_50, %c0_51], %94 {strides = array<i32>} : memref<8x8x128xf32, #tpu.memory_space<vmem>>, vector<1x8x128xf32>,
    %c5_i32 = arith.constant 5 : i32
    %cst_52 = arith.constant dense<0.000000e+00> : vector<8x128xf32>
    %95 = tpu.matmul %90, %12, %cst_52 {dimension_numbers = #tpu.dot_dimension_numbers<[1], [0], [0], [1], [0, 0, 1, 1], [], []>} : vector<8x128xf32>, vector<128x128xf32>, vector<8x128xf32> -> vector<8x128xf32>
    %96 = vector.broadcast %13 : vector<1x128xf32> to vector<8x128xf32>
    %97 = arith.addf %95, %96 : vector<8x128xf32>
    %98 = arith.index_cast %c5_i32 : i32 to index
    %c0_53 = arith.constant 0 : index
    %c0_54 = arith.constant 0 : index
    %99 = vector.load %arg9[%98, %c0_53, %c0_54] : memref<8x8x128xf32, #tpu.memory_space<vmem>>, vector<1x8x128xf32>
    %100 = vector.shape_cast %99 : vector<1x8x128xf32> to vector<8x128xf32>
    %101 = arith.addf %100, %97 : vector<8x128xf32>
    %cst_55 = arith.constant 0.000000e+00 : f32
    %102 = vector.broadcast %cst_55 : f32 to vector<8x128xf32>
    %103 = arith.maximumf %101, %102 : vector<8x128xf32>
    %104 = arith.addf %103, %97 : vector<8x128xf32>
    %cst_56 = arith.constant 0.000000e+00 : f32
    %105 = vector.broadcast %cst_56 : f32 to vector<8x128xf32>
    %106 = arith.maximumf %104, %105 : vector<8x128xf32>
    %107 = arith.index_cast %c5_i32 : i32 to index
    %c0_57 = arith.constant 0 : index
    %c0_58 = arith.constant 0 : index
    %108 = vector.load %arg7[%107, %c0_57, %c0_58] : memref<8x8x128xf32, #tpu.memory_space<vmem>>, vector<1x8x128xf32>
    %109 = vector.shape_cast %108 : vector<1x8x128xf32> to vector<8x128xf32>
    %110 = vector.shape_cast %106 : vector<8x128xf32> to vector<1x8x128xf32>
    tpu.vector_store %arg7[%107, %c0_57, %c0_58], %110 {strides = array<i32>} : memref<8x8x128xf32, #tpu.memory_space<vmem>>, vector<1x8x128xf32>,
    %c6_i32 = arith.constant 6 : i32
    %cst_59 = arith.constant dense<0.000000e+00> : vector<8x128xf32>
    %111 = tpu.matmul %106, %12, %cst_59 {dimension_numbers = #tpu.dot_dimension_numbers<[1], [0], [0], [1], [0, 0, 1, 1], [], []>} : vector<8x128xf32>, vector<128x128xf32>, vector<8x128xf32> -> vector<8x128xf32>
    %112 = vector.broadcast %13 : vector<1x128xf32> to vector<8x128xf32>
    %113 = arith.addf %111, %112 : vector<8x128xf32>
    %114 = arith.index_cast %c6_i32 : i32 to index
    %c0_60 = arith.constant 0 : index
    %c0_61 = arith.constant 0 : index
    %115 = vector.load %arg9[%114, %c0_60, %c0_61] : memref<8x8x128xf32, #tpu.memory_space<vmem>>, vector<1x8x128xf32>
    %116 = vector.shape_cast %115 : vector<1x8x128xf32> to vector<8x128xf32>
    %117 = arith.addf %116, %113 : vector<8x128xf32>
    %cst_62 = arith.constant 0.000000e+00 : f32
    %118 = vector.broadcast %cst_62 : f32 to vector<8x128xf32>
    %119 = arith.maximumf %117, %118 : vector<8x128xf32>
    %120 = arith.addf %119, %113 : vector<8x128xf32>
    %cst_63 = arith.constant 0.000000e+00 : f32
    %121 = vector.broadcast %cst_63 : f32 to vector<8x128xf32>
    %122 = arith.maximumf %120, %121 : vector<8x128xf32>
    %123 = arith.index_cast %c6_i32 : i32 to index
    %c0_64 = arith.constant 0 : index
    %c0_65 = arith.constant 0 : index
    %124 = vector.load %arg7[%123, %c0_64, %c0_65] : memref<8x8x128xf32, #tpu.memory_space<vmem>>, vector<1x8x128xf32>
    %125 = vector.shape_cast %124 : vector<1x8x128xf32> to vector<8x128xf32>
    %126 = vector.shape_cast %122 : vector<8x128xf32> to vector<1x8x128xf32>
    tpu.vector_store %arg7[%123, %c0_64, %c0_65], %126 {strides = array<i32>} : memref<8x8x128xf32, #tpu.memory_space<vmem>>, vector<1x8x128xf32>,
    %c7_i32 = arith.constant 7 : i32
    %cst_66 = arith.constant dense<0.000000e+00> : vector<8x128xf32>
    %127 = tpu.matmul %122, %12, %cst_66 {dimension_numbers = #tpu.dot_dimension_numbers<[1], [0], [0], [1], [0, 0, 1, 1], [], []>} : vector<8x128xf32>, vector<128x128xf32>, vector<8x128xf32> -> vector<8x128xf32>
    %128 = vector.broadcast %13 : vector<1x128xf32> to vector<8x128xf32>
    %129 = arith.addf %127, %128 : vector<8x128xf32>
    %130 = arith.index_cast %c7_i32 : i32 to index
    %c0_67 = arith.constant 0 : index
    %c0_68 = arith.constant 0 : index
    %131 = vector.load %arg9[%130, %c0_67, %c0_68] : memref<8x8x128xf32, #tpu.memory_space<vmem>>, vector<1x8x128xf32>
    %132 = vector.shape_cast %131 : vector<1x8x128xf32> to vector<8x128xf32>
    %133 = arith.addf %132, %129 : vector<8x128xf32>
    %cst_69 = arith.constant 0.000000e+00 : f32
    %134 = vector.broadcast %cst_69 : f32 to vector<8x128xf32>
    %135 = arith.maximumf %133, %134 : vector<8x128xf32>
    %136 = arith.addf %135, %129 : vector<8x128xf32>
    %cst_70 = arith.constant 0.000000e+00 : f32
    %137 = vector.broadcast %cst_70 : f32 to vector<8x128xf32>
    %138 = arith.maximumf %136, %137 : vector<8x128xf32>
    %139 = arith.index_cast %c7_i32 : i32 to index
    %c0_71 = arith.constant 0 : index
    %c0_72 = arith.constant 0 : index
    %140 = vector.load %arg7[%139, %c0_71, %c0_72] : memref<8x8x128xf32, #tpu.memory_space<vmem>>, vector<1x8x128xf32>
    %141 = vector.shape_cast %140 : vector<1x8x128xf32> to vector<8x128xf32>
    %142 = vector.shape_cast %138 : vector<8x128xf32> to vector<1x8x128xf32>
    tpu.vector_store %arg7[%139, %c0_71, %c0_72], %142 {strides = array<i32>} : memref<8x8x128xf32, #tpu.memory_space<vmem>>, vector<1x8x128xf32>,
    %c8_i32 = arith.constant 8 : i32
    %c0_73 = arith.constant 0 : index
    %c0_74 = arith.constant 0 : index
    %143 = vector.load %arg8[%c0_73, %c0_74] : memref<8x128xf32, #tpu.memory_space<vmem>>, vector<8x128xf32>
    tpu.vector_store %arg8[%c0_73, %c0_74], %138 {strides = array<i32>} : memref<8x128xf32, #tpu.memory_space<vmem>>, vector<8x128xf32>,
    return
  }
  func.func @transform_0(%arg0: i32) -> (i32, i32, i32) {
    %c0_i32 = arith.constant 0 : i32
    %c0_i32_0 = arith.constant 0 : i32
    %c0_i32_1 = arith.constant 0 : i32
    return %arg0, %c0_i32, %c0_i32_0 : i32, i32, i32
  }
  func.func @transform_1(%arg0: i32) -> (i32, i32) {
    %c0_i32 = arith.constant 0 : i32
    %c0_i32_0 = arith.constant 0 : i32
    %c0_i32_1 = arith.constant 0 : i32
    return %c0_i32, %c0_i32_0 : i32, i32
  }
  func.func @transform_2(%arg0: i32) -> (i32, i32) {
    %c0_i32 = arith.constant 0 : i32
    %c0_i32_0 = arith.constant 0 : i32
    %c0_i32_1 = arith.constant 0 : i32
    return %c0_i32, %c0_i32_0 : i32, i32
  }
  func.func @transform_3(%arg0: i32) -> (i32, i32) {
    %c0_i32 = arith.constant 0 : i32
    %c0_i32_0 = arith.constant 0 : i32
    %c0_i32_1 = arith.constant 0 : i32
    return %c0_i32, %c0_i32_0 : i32, i32
  }
  func.func @transform_4(%arg0: i32) -> (i32, i32) {
    %c0_i32 = arith.constant 0 : i32
    %c0_i32_0 = arith.constant 0 : i32
    %c0_i32_1 = arith.constant 0 : i32
    return %c0_i32, %c0_i32_0 : i32, i32
  }
  func.func @transform_5(%arg0: i32) -> (i32, i32) {
    %c0_i32 = arith.constant 0 : i32
    %c0_i32_0 = arith.constant 0 : i32
    %c0_i32_1 = arith.constant 0 : i32
    return %c0_i32, %c0_i32_0 : i32, i32
  }
  func.func @transform_6(%arg0: i32) -> (i32, i32, i32) {
    %c0_i32 = arith.constant 0 : i32
    %c0_i32_0 = arith.constant 0 : i32
    %c0_i32_1 = arith.constant 0 : i32
    return %arg0, %c0_i32, %c0_i32_0 : i32, i32, i32
  }
}

</mosaic_0001>

<llo_original>
// kernel: custom_rnn_sequence.1
$region0: #{custom_rnn_sequence.1}
  #allocation0 [shape = 'u32[]', space=smem, size = 0x4, offset = 0x4, fixed_abs, tag = 'smem constant byte address 0x4 - core index']
  #allocation1 [shape = 'u32[144,128]{1,0:T(1,128)}', space=vmem, size = 0x12000, scoped, tag = 'internal scratch']
  #allocation2 [shape = 'f32[8,128]{1,0:T(8,128)}', space=vmem, size = 0x1000, scoped, tag = 'scratch operand']
  #allocation3 [shape = 'f32[8,8,128]{2,1,0:T(8,128)}', space=vmem, size = 0x8000, scoped, tag = 'scratch operand']
  %s0 = inlined_call_operand.vmem [shape: f32[16,8,128], index: 0, kind: input, shape index: {}]
  %s1 = inlined_call_operand.vmem [shape: f32[8,128], index: 1, kind: input, shape index: {}]
  %s2 = inlined_call_operand.vmem [shape: f32[128,128], index: 2, kind: input, shape index: {}]
  %s3 = inlined_call_operand.vmem [shape: f32[1,128], index: 3, kind: input, shape index: {}]
  %s4 = inlined_call_operand.vmem [shape: f32[128,128], index: 4, kind: input, shape index: {}]
  %s5 = inlined_call_operand.vmem [shape: f32[1,128], index: 5, kind: input, shape index: {}]
  %s6 = inlined_call_operand.vmem [shape: f32[16,8,128], index: 6, kind: output, shape index: {}]
  %s7 = sld [smem:[#allocation0]]
  $region61: #{custom_rnn_sequence.1} parent=0
    _
  %s9 = ssub.s32 1, %s7
  %s10 = scalar_select 0, %s9, %s7
  loop: start=0, step=1, limit=4
  $region2: #{custom_rnn_sequence.1} parent=0 // loop_pre_header
    _
  $region3: #{custom_rnn_sequence.1} parent=0 // loop_header
    %s12 = sphi 0, %s16
    %p13 = scmp.ge.s32.totalorder %s12, 4
    %s22 = sphi 0, %s24
    %s25 = sphi 0, %s22
    %s26 = sphi 0, %s25
    %s42 = sphi 0, %s26
    %s46 = sphi 0, %s46
    %s48 = sphi 0, %s46
    %s49 = sphi 0, %s48
    %s63 = sphi 0, %s49
    %s67 = sphi 0, %s67
    %s69 = sphi 0, %s67
    %s70 = sphi 0, %s69
    %s84 = sphi 0, %s70
    %s88 = sphi 0, %s88
    %s90 = sphi 0, %s88
    %s91 = sphi 0, %s90
    %s105 = sphi 0, %s91
    %s109 = sphi 0, %s109
    %s111 = sphi 0, %s109
    %s112 = sphi 0, %s111
    %s126 = sphi 0, %s112
    %s130 = sphi 0, %s130
    %s132 = sphi 0, %s130
    %s133 = sphi 0, %s132
    %s147 = sphi 0, %s133
    %s153 = sphi 0, %s155
    %s156 = sphi 0, %s153
    %s157 = sphi 0, %s156
    %s173 = sphi 0, %s157
  $region4: #{custom_rnn_sequence.1} parent=0 // loop_header_branch
    %15 = sbr.rel (%p13) target = $region8
  $region5: #{custom_rnn_sequence.1} parent=0 // loop_body
    %s17 = ssub.s32 %s12, 1
    %s18 = ssub.s32 %s12, 2
    %s19 = sadd.s32 %s12, 1
    %s20 = ssub.s32 %s12, %s19
    %p21 = scmp.eq.s32.totalorder %s20, 0
    %s23 = sadd.s32 %s22, 1
    %s24 = scalar_select %p21, %s22, %s23
    %p27 = pneg %p21
    %p28 = scmp.eq.s32.totalorder %s12, 1
    %p29 = por %p27, %p28
    %p30 = scmp.ne.s32.totalorder %s22, %s25
    %p31 = scmp.eq.s32.totalorder %s12, 0
    %p32 = por %p30, %p31
    %p33 = scmp.ne.s32.totalorder %s22, %s25
    %p34 = scmp.eq.s32.totalorder %s17, 1
    %p35 = por %p33, %p34
    %p36 = scmp.ne.s32.totalorder %s25, %s26
    %p37 = scmp.eq.s32.totalorder %s17, 0
    %p38 = por %p36, %p37
    %p39 = scmp.ne.s32.totalorder %s25, %s26
    %p40 = scmp.eq.s32.totalorder %s18, 1
    %p41 = por %p39, %p40
    %p43 = scmp.ne.s32.totalorder %s26, %s42
    %p44 = scmp.eq.s32.totalorder %s18, 0
    %p45 = por %p43, %p44
    %s47 = sadd.s32 %s46, 1
    %p50 = scmp.eq.s32.totalorder %s12, 1
    %p51 = scmp.ne.s32.totalorder %s46, %s48
    %p52 = scmp.eq.s32.totalorder %s12, 0
    %p53 = por %p51, %p52
    %p54 = scmp.ne.s32.totalorder %s46, %s48
    %p55 = scmp.eq.s32.totalorder %s17, 1
    %p56 = por %p54, %p55
    %p57 = scmp.ne.s32.totalorder %s48, %s49
    %p58 = scmp.eq.s32.totalorder %s17, 0
    %p59 = por %p57, %p58
    %p60 = scmp.ne.s32.totalorder %s48, %s49
    %p61 = scmp.eq.s32.totalorder %s18, 1
    %p62 = por %p60, %p61
    %p64 = scmp.ne.s32.totalorder %s49, %s63
    %p65 = scmp.eq.s32.totalorder %s18, 0
    %p66 = por %p64, %p65
    %s68 = sadd.s32 %s67, 1
    %p71 = scmp.eq.s32.totalorder %s12, 1
    %p72 = scmp.ne.s32.totalorder %s67, %s69
    %p73 = scmp.eq.s32.totalorder %s12, 0
    %p74 = por %p72, %p73
    %p75 = scmp.ne.s32.totalorder %s67, %s69
    %p76 = scmp.eq.s32.totalorder %s17, 1
    %p77 = por %p75, %p76
    %p78 = scmp.ne.s32.totalorder %s69, %s70
    %p79 = scmp.eq.s32.totalorder %s17, 0
    %p80 = por %p78, %p79
    %p81 = scmp.ne.s32.totalorder %s69, %s70
    %p82 = scmp.eq.s32.totalorder %s18, 1
    %p83 = por %p81, %p82
    %p85 = scmp.ne.s32.totalorder %s70, %s84
    %p86 = scmp.eq.s32.totalorder %s18, 0
    %p87 = por %p85, %p86
    %s89 = sadd.s32 %s88, 1
    %p92 = scmp.eq.s32.totalorder %s12, 1
    %p93 = scmp.ne.s32.totalorder %s88, %s90
    %p94 = scmp.eq.s32.totalorder %s12, 0
    %p95 = por %p93, %p94
    %p96 = scmp.ne.s32.totalorder %s88, %s90
    %p97 = scmp.eq.s32.totalorder %s17, 1
    %p98 = por %p96, %p97
    %p99 = scmp.ne.s32.totalorder %s90, %s91
    %p100 = scmp.eq.s32.totalorder %s17, 0
    %p101 = por %p99, %p100
    %p102 = scmp.ne.s32.totalorder %s90, %s91
    %p103 = scmp.eq.s32.totalorder %s18, 1
    %p104 = por %p102, %p103
    %p106 = scmp.ne.s32.totalorder %s91, %s105
    %p107 = scmp.eq.s32.totalorder %s18, 0
    %p108 = por %p106, %p107
    %s110 = sadd.s32 %s109, 1
    %p113 = scmp.eq.s32.totalorder %s12, 1
    %p114 = scmp.ne.s32.totalorder %s109, %s111
    %p115 = scmp.eq.s32.totalorder %s12, 0
    %p116 = por %p114, %p115
    %p117 = scmp.ne.s32.totalorder %s109, %s111
    %p118 = scmp.eq.s32.totalorder %s17, 1
    %p119 = por %p117, %p118
    %p120 = scmp.ne.s32.totalorder %s111, %s112
    %p121 = scmp.eq.s32.totalorder %s17, 0
    %p122 = por %p120, %p121
    %p123 = scmp.ne.s32.totalorder %s111, %s112
    %p124 = scmp.eq.s32.totalorder %s18, 1
    %p125 = por %p123, %p124
    %p127 = scmp.ne.s32.totalorder %s112, %s126
    %p128 = scmp.eq.s32.totalorder %s18, 0
    %p129 = por %p127, %p128
    %s131 = sadd.s32 %s130, 1
    %p134 = scmp.eq.s32.totalorder %s12, 1
    %p135 = scmp.ne.s32.totalorder %s130, %s132
    %p136 = scmp.eq.s32.totalorder %s12, 0
    %p137 = por %p135, %p136
    %p138 = scmp.ne.s32.totalorder %s130, %s132
    %p139 = scmp.eq.s32.totalorder %s17, 1
    %p140 = por %p138, %p139
    %p141 = scmp.ne.s32.totalorder %s132, %s133
    %p142 = scmp.eq.s32.totalorder %s17, 0
    %p143 = por %p141, %p142
    %p144 = scmp.ne.s32.totalorder %s132, %s133
    %p145 = scmp.eq.s32.totalorder %s18, 1
    %p146 = por %p144, %p145
    %p148 = scmp.ne.s32.totalorder %s133, %s147
    %p149 = scmp.eq.s32.totalorder %s18, 0
    %p150 = por %p148, %p149
    %s151 = ssub.s32 %s12, %s19
    %p152 = scmp.eq.s32.totalorder %s151, 0
    %s154 = sadd.s32 %s153, 1
    %s155 = scalar_select %p152, %s153, %s154
    %p158 = pneg %p152
    %p159 = scmp.eq.s32.totalorder %s12, 1
    %p160 = por %p158, %p159
    %p161 = scmp.ne.s32.totalorder %s153, %s156
    %p162 = scmp.eq.s32.totalorder %s12, 0
    %p163 = por %p161, %p162
    %p164 = scmp.ne.s32.totalorder %s153, %s156
    %p165 = scmp.eq.s32.totalorder %s17, 1
    %p166 = por %p164, %p165
    %p167 = scmp.ne.s32.totalorder %s156, %s157
    %p168 = scmp.eq.s32.totalorder %s17, 0
    %p169 = por %p167, %p168
    %p170 = scmp.ne.s32.totalorder %s156, %s157
    %p171 = scmp.eq.s32.totalorder %s18, 1
    %p172 = por %p170, %p171
    %p174 = scmp.ne.s32.totalorder %s157, %s173
    %p175 = scmp.eq.s32.totalorder %s18, 0
    %p176 = por %p174, %p175
    %p177 = scmp.le.s32.totalorder 1, %s12
    %p178 = scmp.lt.s32.totalorder %s12, 3
    %p179 = pnand %p177, %p178
    %p180 = pneg %p179
    // Predicated region
    $region9: #{custom_rnn_sequence.1} parent=5 // pred_check
      _
    $region10: #{custom_rnn_sequence.1} parent=5 // pred_check_branch
      %182 = sbr.rel (%p179) target = $region12
    $region11: #{custom_rnn_sequence.1} parent=5 // pred_region
      %s183 = ssub.s32 %s12, 1
      // Predicated region
      $region13: #{custom_rnn_sequence.1} parent=11 // pred_check
        %p184 = pneg %p59
      $region14: #{custom_rnn_sequence.1} parent=11 // pred_check_branch
        %186 = sbr.rel (%p184) target = $region16
      $region15: #{custom_rnn_sequence.1} parent=11 // pred_region
        _
      $region16: #{custom_rnn_sequence.1} parent=11 // pred_fallthru
        _
      // Predicated region
      $region17: #{custom_rnn_sequence.1} parent=11 // pred_check
        %p187 = pneg %p80
      $region18: #{custom_rnn_sequence.1} parent=11 // pred_check_branch
        %189 = sbr.rel (%p187) target = $region20
      $region19: #{custom_rnn_sequence.1} parent=11 // pred_region
        _
      $region20: #{custom_rnn_sequence.1} parent=11 // pred_fallthru
        _
      // Predicated region
      $region21: #{custom_rnn_sequence.1} parent=11 // pred_check
        %p190 = pneg %p101
      $region22: #{custom_rnn_sequence.1} parent=11 // pred_check_branch
        %192 = sbr.rel (%p190) target = $region24
      $region23: #{custom_rnn_sequence.1} parent=11 // pred_region
        _
      $region24: #{custom_rnn_sequence.1} parent=11 // pred_fallthru
        _
      // Predicated region
      $region25: #{custom_rnn_sequence.1} parent=11 // pred_check
        %p193 = pneg %p122
      $region26: #{custom_rnn_sequence.1} parent=11 // pred_check_branch
        %195 = sbr.rel (%p193) target = $region28
      $region27: #{custom_rnn_sequence.1} parent=11 // pred_region
        _
      $region28: #{custom_rnn_sequence.1} parent=11 // pred_fallthru
        _
      // Predicated region
      $region29: #{custom_rnn_sequence.1} parent=11 // pred_check
        %p196 = pneg %p143
      $region30: #{custom_rnn_sequence.1} parent=11 // pred_check_branch
        %198 = sbr.rel (%p196) target = $region32
      $region31: #{custom_rnn_sequence.1} parent=11 // pred_region
        _
      $region32: #{custom_rnn_sequence.1} parent=11 // pred_fallthru
        _
    $region12: #{custom_rnn_sequence.1} parent=5 // pred_fallthru
      _
    %p199 = scmp.lt.s32.totalorder %s12, 2
    // Predicated region
    $region33: #{custom_rnn_sequence.1} parent=5 // pred_check
      %p200 = pneg %p199
    $region34: #{custom_rnn_sequence.1} parent=5 // pred_check_branch
      %202 = sbr.rel (%p200) target = $region36
    $region35: #{custom_rnn_sequence.1} parent=5 // pred_region
      // Predicated region
      $region37: #{custom_rnn_sequence.1} parent=35 // pred_check
        %p203 = pneg %p32
      $region38: #{custom_rnn_sequence.1} parent=35 // pred_check_branch
        %205 = sbr.rel (%p203) target = $region40
      $region39: #{custom_rnn_sequence.1} parent=35 // pred_region
        %s206 = smul.u32 8, %s12
        %p207 = scmp.lt.s32.totalorder %s206, 15
        %s208 = scalar_select %p207, %s206, 15
        %s209 = smul.addr %s208, 8
        %s210 = scalar_lea.vmem %s0, %s209
        %s211 = smul.u32 8, %s12
      $region40: #{custom_rnn_sequence.1} parent=35 // pred_fallthru
        _
    $region36: #{custom_rnn_sequence.1} parent=5 // pred_fallthru
      _
    %p212 = scmp.le.s32.totalorder 1, %s12
    %p213 = scmp.lt.s32.totalorder %s12, 3
    %p214 = pnand %p212, %p213
    %p215 = pneg %p214
    // Predicated region
    $region41: #{custom_rnn_sequence.1} parent=5 // pred_check
      _
    $region42: #{custom_rnn_sequence.1} parent=5 // pred_check_branch
      %217 = sbr.rel (%p214) target = $region44
    $region43: #{custom_rnn_sequence.1} parent=5 // pred_region
      %s218 = ssub.s32 %s12, 1
      %s219 = smul.u32 8, %s17
      %p220 = scmp.lt.s32.totalorder %s219, 15
      %s221 = scalar_select %p220, %s219, 15
      %s222 = smul.addr %s221, 8
      %s223 = scalar_lea.vmem %s0, %s222
      %p224 = pneg %p38
      %p225 = pneg %p35
      %p226 = pneg %p59
      %p227 = pneg %p56
      %p228 = pneg %p80
      %p229 = pneg %p77
      %p230 = pneg %p101
      %p231 = pneg %p98
      %p232 = pneg %p122
      %p233 = pneg %p119
      %p234 = pneg %p143
      %p235 = pneg %p140
      %p236 = pneg %p169
      %p237 = pneg %p166
      %s238 = smul.u32 8, %s17
      %p239 = scmp.lt.s32.totalorder %s238, 15
      %s240 = scalar_select %p239, %s238, 15
      %s241 = smul.addr %s240, 8
      %s242 = scalar_lea.vmem %s6, %s241
      %s243 = smul.u32 8, %s17
      %p244 = scmp.lt.s32.totalorder %s243, 15
      %s245 = scalar_select %p244, %s243, 15
      %s246 = smul.addr %s245, 8
      %s247 = scalar_lea.vmem %s0, %s246
      %s248 = smul.u32 8, %s17
      %s249 = smul.u32 8, %s17
      %p250 = scmp.lt.s32.totalorder %s249, 15
      %s251 = scalar_select %p250, %s249, 15
      %s252 = smul.addr %s251, 8
      %s253 = scalar_lea.vmem %s6, %s252
      %s254 = smul.u32 8, %s17
      %p255 = scmp.eq.s32.totalorder %s17, 0
      // Predicated region
      $region45: #{custom_rnn_sequence.1} parent=43 // pred_check
        %p256 = pneg %p255
      $region46: #{custom_rnn_sequence.1} parent=43 // pred_check_branch
        %258 = sbr.rel (%p256) target = $region48
      $region47: #{custom_rnn_sequence.1} parent=43 // pred_region
        %v259 = vld [vmem:[%s1] sm:$0xff]
        %260 = vst [vmem:[#allocation2] sm:$0xff] %v259
      $region48: #{custom_rnn_sequence.1} parent=43 // pred_fallthru
        _
      %v261 = vld [vmem:[%s247] sm:$0xff]
      %v262 = vld [vmem:[%s247 + $0x8] sm:$0xff]
      %v263 = vld [vmem:[%s247 + $0x10] sm:$0xff]
      %v264 = vld [vmem:[%s247 + $0x18] sm:$0xff]
      %v265 = vld [vmem:[%s247 + $0x20] sm:$0xff]
      %v266 = vld [vmem:[%s247 + $0x28] sm:$0xff]
      %v267 = vld [vmem:[%s247 + $0x30] sm:$0xff]
      %v268 = vld [vmem:[%s247 + $0x38] sm:$0xff]
      %v269 = vld [vmem:[%s2] sm:$0xff]
      %v270 = vld [vmem:[%s2 + $0x8] sm:$0xff]
      %v271 = vld [vmem:[%s2 + $0x10] sm:$0xff]
      %v272 = vld [vmem:[%s2 + $0x18] sm:$0xff]
      %v273 = vld [vmem:[%s2 + $0x20] sm:$0xff]
      %v274 = vld [vmem:[%s2 + $0x28] sm:$0xff]
      %v275 = vld [vmem:[%s2 + $0x30] sm:$0xff]
      %v276 = vld [vmem:[%s2 + $0x38] sm:$0xff]
      %v277 = vld [vmem:[%s2 + $0x40] sm:$0xff]
      %v278 = vld [vmem:[%s2 + $0x48] sm:$0xff]
      %v279 = vld [vmem:[%s2 + $0x50] sm:$0xff]
      %v280 = vld [vmem:[%s2 + $0x58] sm:$0xff]
      %v281 = vld [vmem:[%s2 + $0x60] sm:$0xff]
      %v282 = vld [vmem:[%s2 + $0x68] sm:$0xff]
      %v283 = vld [vmem:[%s2 + $0x70] sm:$0xff]
      %v284 = vld [vmem:[%s2 + $0x78] sm:$0xff]
      %v285 = vld [vmem:[%s3] sm:$0x1]
      %v287 = vlaneseq
      %v288 = vshrl.u32 %v287, 7
      %v289 = vsub.s32 0, %v288
      %v290 = vrot.slane %v285, %v289
      %292 = vmatprep.subr.mxu0 0.0
      %293 = vmatpush1.msra.mxu0 %v284
      %294 = vmatprep.subr.mxu0 0.0
      %295 = vmatpush1.msra.mxu0 %v283
      %296 = vmatprep.subr.mxu0 0.0
      %297 = vmatpush1.msra.mxu0 %v282
      %298 = vmatprep.subr.mxu0 0.0
      %299 = vmatpush1.msra.mxu0 %v281
      %300 = vmatprep.subr.mxu0 0.0
      %301 = vmatpush1.msra.mxu0 %v280
      %302 = vmatprep.subr.mxu0 0.0
      %303 = vmatpush1.msra.mxu0 %v279
      %304 = vmatprep.subr.mxu0 0.0
      %305 = vmatpush1.msra.mxu0 %v278
      %306 = vmatprep.subr.mxu0 0.0
      %307 = vmatpush1.msra.mxu0 %v277
      %308 = vmatprep.subr.mxu0 0.0
      %309 = vmatpush1.msra.mxu0 %v276
      %310 = vmatprep.subr.mxu0 0.0
      %311 = vmatpush1.msra.mxu0 %v275
      %312 = vmatprep.subr.mxu0 0.0
      %313 = vmatpush1.msra.mxu0 %v274
      %314 = vmatprep.subr.mxu0 0.0
      %315 = vmatpush1.msra.mxu0 %v273
      %316 = vmatprep.subr.mxu0 0.0
      %317 = vmatpush1.msra.mxu0 %v272
      %318 = vmatprep.subr.mxu0 0.0
      %319 = vmatpush1.msra.mxu0 %v271
      %320 = vmatprep.subr.mxu0 0.0
      %321 = vmatpush1.msra.mxu0 %v270
      %322 = vmatprep.subr.mxu0 0.0
      %323 = vmatpush1.msra.mxu0 %v269
      %324 = vmatprep.subr.mxu0 0.0
      %325 = vmatpush2.msra.mxu0 0.0
      %326 = vmatprep.subr.mxu0 0.0
      %327 = vmatpush2.msra.mxu0 0.0
      %328 = vmatprep.subr.mxu0 0.0
      %329 = vmatpush2.msra.mxu0 0.0
      %330 = vmatprep.subr.mxu0 0.0
      %331 = vmatpush2.msra.mxu0 0.0
      %332 = vmatprep.subr.mxu0 0.0
      %333 = vmatpush2.msra.mxu0 0.0
      %334 = vmatprep.subr.mxu0 0.0
      %335 = vmatpush2.msra.mxu0 0.0
      %336 = vmatprep.subr.mxu0 0.0
      %337 = vmatpush2.msra.mxu0 0.0
      %338 = vmatprep.subr.mxu0 0.0
      %339 = vmatpush2.msra.mxu0 0.0
      %340 = vmatprep.subr.mxu0 0.0
      %341 = vmatpush2.msra.mxu0 0.0
      %342 = vmatprep.subr.mxu0 0.0
      %343 = vmatpush2.msra.mxu0 0.0
      %344 = vmatprep.subr.mxu0 0.0
      %345 = vmatpush2.msra.mxu0 0.0
      %346 = vmatprep.subr.mxu0 0.0
      %347 = vmatpush2.msra.mxu0 0.0
      %348 = vmatprep.subr.mxu0 0.0
      %349 = vmatpush2.msra.mxu0 0.0
      %350 = vmatprep.subr.mxu0 0.0
      %351 = vmatpush2.msra.mxu0 0.0
      %352 = vmatprep.subr.mxu0 0.0
      %353 = vmatpush2.msra.mxu0 0.0
      %354 = vmatprep.subr.mxu0 0.0
      %355 = vmatpush2.msra.mxu0 0.0
      %356 = vmatprep.mubr.f32.mxu0 0.0
      %357 = vmatmul.mubr.f32.gmra.mxu0 %v261
      %v358 = vpop.f32.mrf.mxu0
      %v359 = vadd.f32 %v290, %v358
      %v360 = vpop.f32.mrf.mxu0
      %361 = vmatprep.mubr.f32.mxu0 0.0
      %362 = vmatmul.mubr.f32.gmra.mxu0 %v262
      %v363 = vpop.f32.mrf.mxu0
      %v364 = vadd.f32 %v290, %v363
      %v365 = vpop.f32.mrf.mxu0
      %366 = vmatprep.mubr.f32.mxu0 0.0
      %367 = vmatmul.mubr.f32.gmra.mxu0 %v263
      %v368 = vpop.f32.mrf.mxu0
      %v369 = vadd.f32 %v290, %v368
      %v370 = vpop.f32.mrf.mxu0
      %371 = vmatprep.mubr.f32.mxu0 0.0
      %372 = vmatmul.mubr.f32.gmra.mxu0 %v264
      %v373 = vpop.f32.mrf.mxu0
      %v374 = vadd.f32 %v290, %v373
      %v375 = vpop.f32.mrf.mxu0
      %376 = vmatprep.mubr.f32.mxu0 0.0
      %377 = vmatmul.mubr.f32.gmra.mxu0 %v265
      %v378 = vpop.f32.mrf.mxu0
      %v379 = vadd.f32 %v290, %v378
      %v380 = vpop.f32.mrf.mxu0
      %381 = vmatprep.mubr.f32.mxu0 0.0
      %382 = vmatmul.mubr.f32.gmra.mxu0 %v266
      %v383 = vpop.f32.mrf.mxu0
      %v384 = vadd.f32 %v290, %v383
      %v385 = vpop.f32.mrf.mxu0
      %386 = vmatprep.mubr.f32.mxu0 0.0
      %387 = vmatmul.mubr.f32.gmra.mxu0 %v267
      %v388 = vpop.f32.mrf.mxu0
      %v389 = vadd.f32 %v290, %v388
      %v390 = vpop.f32.mrf.mxu0
      %391 = vmatprep.mubr.f32.mxu0 0.0
      %392 = vmatmul.mubr.f32.gmra.mxu0 %v268
      %v393 = vpop.f32.mrf.mxu0
      %v394 = vadd.f32 %v290, %v393
      %v395 = vpop.f32.mrf.mxu0
      %396 = vdwg.mxu0
      %397 = vst [vmem:[#allocation3] sm:$0xff] %v359
      %398 = vst [vmem:[#allocation3 + $0x8] sm:$0xff] %v364
      %399 = vst [vmem:[#allocation3 + $0x10] sm:$0xff] %v369
      %400 = vst [vmem:[#allocation3 + $0x18] sm:$0xff] %v374
      %401 = vst [vmem:[#allocation3 + $0x20] sm:$0xff] %v379
      %402 = vst [vmem:[#allocation3 + $0x28] sm:$0xff] %v384
      %403 = vst [vmem:[#allocation3 + $0x30] sm:$0xff] %v389
      %404 = vst [vmem:[#allocation3 + $0x38] sm:$0xff] %v394
      %v405 = vld [vmem:[%s4] sm:$0xff]
      %v406 = vld [vmem:[%s4 + $0x8] sm:$0xff]
      %v407 = vld [vmem:[%s4 + $0x10] sm:$0xff]
      %v408 = vld [vmem:[%s4 + $0x18] sm:$0xff]
      %v409 = vld [vmem:[%s4 + $0x20] sm:$0xff]
      %v410 = vld [vmem:[%s4 + $0x28] sm:$0xff]
      %v411 = vld [vmem:[%s4 + $0x30] sm:$0xff]
      %v412 = vld [vmem:[%s4 + $0x38] sm:$0xff]
      %v413 = vld [vmem:[%s4 + $0x40] sm:$0xff]
      %v414 = vld [vmem:[%s4 + $0x48] sm:$0xff]
      %v415 = vld [vmem:[%s4 + $0x50] sm:$0xff]
      %v416 = vld [vmem:[%s4 + $0x58] sm:$0xff]
      %v417 = vld [vmem:[%s4 + $0x60] sm:$0xff]
      %v418 = vld [vmem:[%s4 + $0x68] sm:$0xff]
      %v419 = vld [vmem:[%s4 + $0x70] sm:$0xff]
      %v420 = vld [vmem:[%s4 + $0x78] sm:$0xff]
      %v421 = vld [vmem:[%s5] sm:$0x1]
      %v422 = vld [vmem:[#allocation2] sm:$0xff]
      %v424 = vlaneseq
      %v425 = vshrl.u32 %v424, 7
      %v426 = vsub.s32 0, %v425
      %v427 = vrot.slane %v421, %v426
      %429 = vmatprep.subr.mxu0 0.0
      %430 = vmatpush1.msra.mxu0 %v420
      %431 = vmatprep.subr.mxu0 0.0
      %432 = vmatpush1.msra.mxu0 %v419
      %433 = vmatprep.subr.mxu0 0.0
      %434 = vmatpush1.msra.mxu0 %v418
      %435 = vmatprep.subr.mxu0 0.0
      %436 = vmatpush1.msra.mxu0 %v417
      %437 = vmatprep.subr.mxu0 0.0
      %438 = vmatpush1.msra.mxu0 %v416
      %439 = vmatprep.subr.mxu0 0.0
      %440 = vmatpush1.msra.mxu0 %v415
      %441 = vmatprep.subr.mxu0 0.0
      %442 = vmatpush1.msra.mxu0 %v414
      %443 = vmatprep.subr.mxu0 0.0
      %444 = vmatpush1.msra.mxu0 %v413
      %445 = vmatprep.subr.mxu0 0.0
      %446 = vmatpush1.msra.mxu0 %v412
      %447 = vmatprep.subr.mxu0 0.0
      %448 = vmatpush1.msra.mxu0 %v411
      %449 = vmatprep.subr.mxu0 0.0
      %450 = vmatpush1.msra.mxu0 %v410
      %451 = vmatprep.subr.mxu0 0.0
      %452 = vmatpush1.msra.mxu0 %v409
      %453 = vmatprep.subr.mxu0 0.0
      %454 = vmatpush1.msra.mxu0 %v408
      %455 = vmatprep.subr.mxu0 0.0
      %456 = vmatpush1.msra.mxu0 %v407
      %457 = vmatprep.subr.mxu0 0.0
      %458 = vmatpush1.msra.mxu0 %v406
      %459 = vmatprep.subr.mxu0 0.0
      %460 = vmatpush1.msra.mxu0 %v405
      %461 = vmatprep.subr.mxu0 0.0
      %462 = vmatpush2.msra.mxu0 0.0
      %463 = vmatprep.subr.mxu0 0.0
      %464 = vmatpush2.msra.mxu0 0.0
      %465 = vmatprep.subr.mxu0 0.0
      %466 = vmatpush2.msra.mxu0 0.0
      %467 = vmatprep.subr.mxu0 0.0
      %468 = vmatpush2.msra.mxu0 0.0
      %469 = vmatprep.subr.mxu0 0.0
      %470 = vmatpush2.msra.mxu0 0.0
      %471 = vmatprep.subr.mxu0 0.0
      %472 = vmatpush2.msra.mxu0 0.0
      %473 = vmatprep.subr.mxu0 0.0
      %474 = vmatpush2.msra.mxu0 0.0
      %475 = vmatprep.subr.mxu0 0.0
      %476 = vmatpush2.msra.mxu0 0.0
      %477 = vmatprep.subr.mxu0 0.0
      %478 = vmatpush2.msra.mxu0 0.0
      %479 = vmatprep.subr.mxu0 0.0
      %480 = vmatpush2.msra.mxu0 0.0
      %481 = vmatprep.subr.mxu0 0.0
      %482 = vmatpush2.msra.mxu0 0.0
      %483 = vmatprep.subr.mxu0 0.0
      %484 = vmatpush2.msra.mxu0 0.0
      %485 = vmatprep.subr.mxu0 0.0
      %486 = vmatpush2.msra.mxu0 0.0
      %487 = vmatprep.subr.mxu0 0.0
      %488 = vmatpush2.msra.mxu0 0.0
      %489 = vmatprep.subr.mxu0 0.0
      %490 = vmatpush2.msra.mxu0 0.0
      %491 = vmatprep.subr.mxu0 0.0
      %492 = vmatpush2.msra.mxu0 0.0
      %493 = vmatprep.mubr.f32.mxu0 0.0
      %494 = vmatmul.mubr.f32.gmra.mxu0 %v422
      %v495 = vpop.f32.mrf.mxu0
      %v496 = vadd.f32 %v427, %v495
      %v497 = vpop.f32.mrf.mxu0
      %498 = vdwg.mxu0
      %v499 = vld [vmem:[#allocation3] sm:$0xff]
      %v500 = vadd.f32 %v499, %v496
      %v501 = vmax.f32 %v500, 0.0
      %v502 = vadd.f32 %v501, %v496
      %v503 = vmax.f32 %v502, 0.0
      %504 = vst [vmem:[%s253] sm:$0xff] %v503
      %505 = vmatprep.subr.mxu0 0.0
      %506 = vmatpush1.msra.mxu0 %v420
      %507 = vmatprep.subr.mxu0 0.0
      %508 = vmatpush1.msra.mxu0 %v419
      %509 = vmatprep.subr.mxu0 0.0
      %510 = vmatpush1.msra.mxu0 %v418
      %511 = vmatprep.subr.mxu0 0.0
      %512 = vmatpush1.msra.mxu0 %v417
      %513 = vmatprep.subr.mxu0 0.0
      %514 = vmatpush1.msra.mxu0 %v416
      %515 = vmatprep.subr.mxu0 0.0
      %516 = vmatpush1.msra.mxu0 %v415
      %517 = vmatprep.subr.mxu0 0.0
      %518 = vmatpush1.msra.mxu0 %v414
      %519 = vmatprep.subr.mxu0 0.0
      %520 = vmatpush1.msra.mxu0 %v413
      %521 = vmatprep.subr.mxu0 0.0
      %522 = vmatpush1.msra.mxu0 %v412
      %523 = vmatprep.subr.mxu0 0.0
      %524 = vmatpush1.msra.mxu0 %v411
      %525 = vmatprep.subr.mxu0 0.0
      %526 = vmatpush1.msra.mxu0 %v410
      %527 = vmatprep.subr.mxu0 0.0
      %528 = vmatpush1.msra.mxu0 %v409
      %529 = vmatprep.subr.mxu0 0.0
      %530 = vmatpush1.msra.mxu0 %v408
      %531 = vmatprep.subr.mxu0 0.0
      %532 = vmatpush1.msra.mxu0 %v407
      %533 = vmatprep.subr.mxu0 0.0
      %534 = vmatpush1.msra.mxu0 %v406
      %535 = vmatprep.subr.mxu0 0.0
      %536 = vmatpush1.msra.mxu0 %v405
      %537 = vmatprep.subr.mxu0 0.0
      %538 = vmatpush2.msra.mxu0 0.0
      %539 = vmatprep.subr.mxu0 0.0
      %540 = vmatpush2.msra.mxu0 0.0
      %541 = vmatprep.subr.mxu0 0.0
      %542 = vmatpush2.msra.mxu0 0.0
      %543 = vmatprep.subr.mxu0 0.0
      %544 = vmatpush2.msra.mxu0 0.0
      %545 = vmatprep.subr.mxu0 0.0
      %546 = vmatpush2.msra.mxu0 0.0
      %547 = vmatprep.subr.mxu0 0.0
      %548 = vmatpush2.msra.mxu0 0.0
      %549 = vmatprep.subr.mxu0 0.0
      %550 = vmatpush2.msra.mxu0 0.0
      %551 = vmatprep.subr.mxu0 0.0
      %552 = vmatpush2.msra.mxu0 0.0
      %553 = vmatprep.subr.mxu0 0.0
      %554 = vmatpush2.msra.mxu0 0.0
      %555 = vmatprep.subr.mxu0 0.0
      %556 = vmatpush2.msra.mxu0 0.0
      %557 = vmatprep.subr.mxu0 0.0
      %558 = vmatpush2.msra.mxu0 0.0
      %559 = vmatprep.subr.mxu0 0.0
      %560 = vmatpush2.msra.mxu0 0.0
      %561 = vmatprep.subr.mxu0 0.0
      %562 = vmatpush2.msra.mxu0 0.0
      %563 = vmatprep.subr.mxu0 0.0
      %564 = vmatpush2.msra.mxu0 0.0
      %565 = vmatprep.subr.mxu0 0.0
      %566 = vmatpush2.msra.mxu0 0.0
      %567 = vmatprep.subr.mxu0 0.0
      %568 = vmatpush2.msra.mxu0 0.0
      %569 = vmatprep.mubr.f32.mxu0 0.0
      %570 = vmatmul.mubr.f32.gmra.mxu0 %v503
      %v571 = vpop.f32.mrf.mxu0
      %v572 = vadd.f32 %v427, %v571
      %v573 = vpop.f32.mrf.mxu0
      %574 = vdwg.mxu0
      %s575 = scalar_lea.vmem [#allocation3], 8
      %v576 = vld [vmem:[%s575] sm:$0xff]
      %v577 = vadd.f32 %v576, %v572
      %v578 = vmax.f32 %v577, 0.0
      %v579 = vadd.f32 %v578, %v572
      %v580 = vmax.f32 %v579, 0.0
      %s581 = scalar_lea.vmem %s253, 8
      %582 = vst [vmem:[%s581] sm:$0xff] %v580
      %583 = vmatprep.subr.mxu0 0.0
      %584 = vmatpush1.msra.mxu0 %v420
      %585 = vmatprep.subr.mxu0 0.0
      %586 = vmatpush1.msra.mxu0 %v419
      %587 = vmatprep.subr.mxu0 0.0
      %588 = vmatpush1.msra.mxu0 %v418
      %589 = vmatprep.subr.mxu0 0.0
      %590 = vmatpush1.msra.mxu0 %v417
      %591 = vmatprep.subr.mxu0 0.0
      %592 = vmatpush1.msra.mxu0 %v416
      %593 = vmatprep.subr.mxu0 0.0
      %594 = vmatpush1.msra.mxu0 %v415
      %595 = vmatprep.subr.mxu0 0.0
      %596 = vmatpush1.msra.mxu0 %v414
      %597 = vmatprep.subr.mxu0 0.0
      %598 = vmatpush1.msra.mxu0 %v413
      %599 = vmatprep.subr.mxu0 0.0
      %600 = vmatpush1.msra.mxu0 %v412
      %601 = vmatprep.subr.mxu0 0.0
      %602 = vmatpush1.msra.mxu0 %v411
      %603 = vmatprep.subr.mxu0 0.0
      %604 = vmatpush1.msra.mxu0 %v410
      %605 = vmatprep.subr.mxu0 0.0
      %606 = vmatpush1.msra.mxu0 %v409
      %607 = vmatprep.subr.mxu0 0.0
      %608 = vmatpush1.msra.mxu0 %v408
      %609 = vmatprep.subr.mxu0 0.0
      %610 = vmatpush1.msra.mxu0 %v407
      %611 = vmatprep.subr.mxu0 0.0
      %612 = vmatpush1.msra.mxu0 %v406
      %613 = vmatprep.subr.mxu0 0.0
      %614 = vmatpush1.msra.mxu0 %v405
      %615 = vmatprep.subr.mxu0 0.0
      %616 = vmatpush2.msra.mxu0 0.0
      %617 = vmatprep.subr.mxu0 0.0
      %618 = vmatpush2.msra.mxu0 0.0
      %619 = vmatprep.subr.mxu0 0.0
      %620 = vmatpush2.msra.mxu0 0.0
      %621 = vmatprep.subr.mxu0 0.0
      %622 = vmatpush2.msra.mxu0 0.0
      %623 = vmatprep.subr.mxu0 0.0
      %624 = vmatpush2.msra.mxu0 0.0
      %625 = vmatprep.subr.mxu0 0.0
      %626 = vmatpush2.msra.mxu0 0.0
      %627 = vmatprep.subr.mxu0 0.0
      %628 = vmatpush2.msra.mxu0 0.0
      %629 = vmatprep.subr.mxu0 0.0
      %630 = vmatpush2.msra.mxu0 0.0
      %631 = vmatprep.subr.mxu0 0.0
      %632 = vmatpush2.msra.mxu0 0.0
      %633 = vmatprep.subr.mxu0 0.0
      %634 = vmatpush2.msra.mxu0 0.0
      %635 = vmatprep.subr.mxu0 0.0
      %636 = vmatpush2.msra.mxu0 0.0
      %637 = vmatprep.subr.mxu0 0.0
      %638 = vmatpush2.msra.mxu0 0.0
      %639 = vmatprep.subr.mxu0 0.0
      %640 = vmatpush2.msra.mxu0 0.0
      %641 = vmatprep.subr.mxu0 0.0
      %642 = vmatpush2.msra.mxu0 0.0
      %643 = vmatprep.subr.mxu0 0.0
      %644 = vmatpush2.msra.mxu0 0.0
      %645 = vmatprep.subr.mxu0 0.0
      %646 = vmatpush2.msra.mxu0 0.0
      %647 = vmatprep.mubr.f32.mxu0 0.0
      %648 = vmatmul.mubr.f32.gmra.mxu0 %v580
      %v649 = vpop.f32.mrf.mxu0
      %v650 = vadd.f32 %v427, %v649
      %v651 = vpop.f32.mrf.mxu0
      %652 = vdwg.mxu0
      %s653 = scalar_lea.vmem [#allocation3], 16
      %v654 = vld [vmem:[%s653] sm:$0xff]
      %v655 = vadd.f32 %v654, %v650
      %v656 = vmax.f32 %v655, 0.0
      %v657 = vadd.f32 %v656, %v650
      %v658 = vmax.f32 %v657, 0.0
      %s659 = scalar_lea.vmem %s253, 16
      %660 = vst [vmem:[%s659] sm:$0xff] %v658
      %661 = vmatprep.subr.mxu0 0.0
      %662 = vmatpush1.msra.mxu0 %v420
      %663 = vmatprep.subr.mxu0 0.0
      %664 = vmatpush1.msra.mxu0 %v419
      %665 = vmatprep.subr.mxu0 0.0
      %666 = vmatpush1.msra.mxu0 %v418
      %667 = vmatprep.subr.mxu0 0.0
      %668 = vmatpush1.msra.mxu0 %v417
      %669 = vmatprep.subr.mxu0 0.0
      %670 = vmatpush1.msra.mxu0 %v416
      %671 = vmatprep.subr.mxu0 0.0
      %672 = vmatpush1.msra.mxu0 %v415
      %673 = vmatprep.subr.mxu0 0.0
      %674 = vmatpush1.msra.mxu0 %v414
      %675 = vmatprep.subr.mxu0 0.0
      %676 = vmatpush1.msra.mxu0 %v413
      %677 = vmatprep.subr.mxu0 0.0
      %678 = vmatpush1.msra.mxu0 %v412
      %679 = vmatprep.subr.mxu0 0.0
      %680 = vmatpush1.msra.mxu0 %v411
      %681 = vmatprep.subr.mxu0 0.0
      %682 = vmatpush1.msra.mxu0 %v410
      %683 = vmatprep.subr.mxu0 0.0
      %684 = vmatpush1.msra.mxu0 %v409
      %685 = vmatprep.subr.mxu0 0.0
      %686 = vmatpush1.msra.mxu0 %v408
      %687 = vmatprep.subr.mxu0 0.0
      %688 = vmatpush1.msra.mxu0 %v407
      %689 = vmatprep.subr.mxu0 0.0
      %690 = vmatpush1.msra.mxu0 %v406
      %691 = vmatprep.subr.mxu0 0.0
      %692 = vmatpush1.msra.mxu0 %v405
      %693 = vmatprep.subr.mxu0 0.0
      %694 = vmatpush2.msra.mxu0 0.0
      %695 = vmatprep.subr.mxu0 0.0
      %696 = vmatpush2.msra.mxu0 0.0
      %697 = vmatprep.subr.mxu0 0.0
      %698 = vmatpush2.msra.mxu0 0.0
      %699 = vmatprep.subr.mxu0 0.0
      %700 = vmatpush2.msra.mxu0 0.0
      %701 = vmatprep.subr.mxu0 0.0
      %702 = vmatpush2.msra.mxu0 0.0
      %703 = vmatprep.subr.mxu0 0.0
      %704 = vmatpush2.msra.mxu0 0.0
      %705 = vmatprep.subr.mxu0 0.0
      %706 = vmatpush2.msra.mxu0 0.0
      %707 = vmatprep.subr.mxu0 0.0
      %708 = vmatpush2.msra.mxu0 0.0
      %709 = vmatprep.subr.mxu0 0.0
      %710 = vmatpush2.msra.mxu0 0.0
      %711 = vmatprep.subr.mxu0 0.0
      %712 = vmatpush2.msra.mxu0 0.0
      %713 = vmatprep.subr.mxu0 0.0
      %714 = vmatpush2.msra.mxu0 0.0
      %715 = vmatprep.subr.mxu0 0.0
      %716 = vmatpush2.msra.mxu0 0.0
      %717 = vmatprep.subr.mxu0 0.0
      %718 = vmatpush2.msra.mxu0 0.0
      %719 = vmatprep.subr.mxu0 0.0
      %720 = vmatpush2.msra.mxu0 0.0
      %721 = vmatprep.subr.mxu0 0.0
      %722 = vmatpush2.msra.mxu0 0.0
      %723 = vmatprep.subr.mxu0 0.0
      %724 = vmatpush2.msra.mxu0 0.0
      %725 = vmatprep.mubr.f32.mxu0 0.0
      %726 = vmatmul.mubr.f32.gmra.mxu0 %v658
      %v727 = vpop.f32.mrf.mxu0
      %v728 = vadd.f32 %v427, %v727
      %v729 = vpop.f32.mrf.mxu0
      %730 = vdwg.mxu0
      %s731 = scalar_lea.vmem [#allocation3], 24
      %v732 = vld [vmem:[%s731] sm:$0xff]
      %v733 = vadd.f32 %v732, %v728
      %v734 = vmax.f32 %v733, 0.0
      %v735 = vadd.f32 %v734, %v728
      %v736 = vmax.f32 %v735, 0.0
      %s737 = scalar_lea.vmem %s253, 24
      %738 = vst [vmem:[%s737] sm:$0xff] %v736
      %739 = vmatprep.subr.mxu0 0.0
      %740 = vmatpush1.msra.mxu0 %v420
      %741 = vmatprep.subr.mxu0 0.0
      %742 = vmatpush1.msra.mxu0 %v419
      %743 = vmatprep.subr.mxu0 0.0
      %744 = vmatpush1.msra.mxu0 %v418
      %745 = vmatprep.subr.mxu0 0.0
      %746 = vmatpush1.msra.mxu0 %v417
      %747 = vmatprep.subr.mxu0 0.0
      %748 = vmatpush1.msra.mxu0 %v416
      %749 = vmatprep.subr.mxu0 0.0
      %750 = vmatpush1.msra.mxu0 %v415
      %751 = vmatprep.subr.mxu0 0.0
      %752 = vmatpush1.msra.mxu0 %v414
      %753 = vmatprep.subr.mxu0 0.0
      %754 = vmatpush1.msra.mxu0 %v413
      %755 = vmatprep.subr.mxu0 0.0
      %756 = vmatpush1.msra.mxu0 %v412
      %757 = vmatprep.subr.mxu0 0.0
      %758 = vmatpush1.msra.mxu0 %v411
      %759 = vmatprep.subr.mxu0 0.0
      %760 = vmatpush1.msra.mxu0 %v410
      %761 = vmatprep.subr.mxu0 0.0
      %762 = vmatpush1.msra.mxu0 %v409
      %763 = vmatprep.subr.mxu0 0.0
      %764 = vmatpush1.msra.mxu0 %v408
      %765 = vmatprep.subr.mxu0 0.0
      %766 = vmatpush1.msra.mxu0 %v407
      %767 = vmatprep.subr.mxu0 0.0
      %768 = vmatpush1.msra.mxu0 %v406
      %769 = vmatprep.subr.mxu0 0.0
      %770 = vmatpush1.msra.mxu0 %v405
      %771 = vmatprep.subr.mxu0 0.0
      %772 = vmatpush2.msra.mxu0 0.0
      %773 = vmatprep.subr.mxu0 0.0
      %774 = vmatpush2.msra.mxu0 0.0
      %775 = vmatprep.subr.mxu0 0.0
      %776 = vmatpush2.msra.mxu0 0.0
      %777 = vmatprep.subr.mxu0 0.0
      %778 = vmatpush2.msra.mxu0 0.0
      %779 = vmatprep.subr.mxu0 0.0
      %780 = vmatpush2.msra.mxu0 0.0
      %781 = vmatprep.subr.mxu0 0.0
      %782 = vmatpush2.msra.mxu0 0.0
      %783 = vmatprep.subr.mxu0 0.0
      %784 = vmatpush2.msra.mxu0 0.0
      %785 = vmatprep.subr.mxu0 0.0
      %786 = vmatpush2.msra.mxu0 0.0
      %787 = vmatprep.subr.mxu0 0.0
      %788 = vmatpush2.msra.mxu0 0.0
      %789 = vmatprep.subr.mxu0 0.0
      %790 = vmatpush2.msra.mxu0 0.0
      %791 = vmatprep.subr.mxu0 0.0
      %792 = vmatpush2.msra.mxu0 0.0
      %793 = vmatprep.subr.mxu0 0.0
      %794 = vmatpush2.msra.mxu0 0.0
      %795 = vmatprep.subr.mxu0 0.0
      %796 = vmatpush2.msra.mxu0 0.0
      %797 = vmatprep.subr.mxu0 0.0
      %798 = vmatpush2.msra.mxu0 0.0
      %799 = vmatprep.subr.mxu0 0.0
      %800 = vmatpush2.msra.mxu0 0.0
      %801 = vmatprep.subr.mxu0 0.0
      %802 = vmatpush2.msra.mxu0 0.0
      %803 = vmatprep.mubr.f32.mxu0 0.0
      %804 = vmatmul.mubr.f32.gmra.mxu0 %v736
      %v805 = vpop.f32.mrf.mxu0
      %v806 = vadd.f32 %v427, %v805
      %v807 = vpop.f32.mrf.mxu0
      %808 = vdwg.mxu0
      %s809 = scalar_lea.vmem [#allocation3], 32
      %v810 = vld [vmem:[%s809] sm:$0xff]
      %v811 = vadd.f32 %v810, %v806
      %v812 = vmax.f32 %v811, 0.0
      %v813 = vadd.f32 %v812, %v806
      %v814 = vmax.f32 %v813, 0.0
      %s815 = scalar_lea.vmem %s253, 32
      %816 = vst [vmem:[%s815] sm:$0xff] %v814
      %817 = vmatprep.subr.mxu0 0.0
      %818 = vmatpush1.msra.mxu0 %v420
      %819 = vmatprep.subr.mxu0 0.0
      %820 = vmatpush1.msra.mxu0 %v419
      %821 = vmatprep.subr.mxu0 0.0
      %822 = vmatpush1.msra.mxu0 %v418
      %823 = vmatprep.subr.mxu0 0.0
      %824 = vmatpush1.msra.mxu0 %v417
      %825 = vmatprep.subr.mxu0 0.0
      %826 = vmatpush1.msra.mxu0 %v416
      %827 = vmatprep.subr.mxu0 0.0
      %828 = vmatpush1.msra.mxu0 %v415
      %829 = vmatprep.subr.mxu0 0.0
      %830 = vmatpush1.msra.mxu0 %v414
      %831 = vmatprep.subr.mxu0 0.0
      %832 = vmatpush1.msra.mxu0 %v413
      %833 = vmatprep.subr.mxu0 0.0
      %834 = vmatpush1.msra.mxu0 %v412
      %835 = vmatprep.subr.mxu0 0.0
      %836 = vmatpush1.msra.mxu0 %v411
      %837 = vmatprep.subr.mxu0 0.0
      %838 = vmatpush1.msra.mxu0 %v410
      %839 = vmatprep.subr.mxu0 0.0
      %840 = vmatpush1.msra.mxu0 %v409
      %841 = vmatprep.subr.mxu0 0.0
      %842 = vmatpush1.msra.mxu0 %v408
      %843 = vmatprep.subr.mxu0 0.0
      %844 = vmatpush1.msra.mxu0 %v407
      %845 = vmatprep.subr.mxu0 0.0
      %846 = vmatpush1.msra.mxu0 %v406
      %847 = vmatprep.subr.mxu0 0.0
      %848 = vmatpush1.msra.mxu0 %v405
      %849 = vmatprep.subr.mxu0 0.0
      %850 = vmatpush2.msra.mxu0 0.0
      %851 = vmatprep.subr.mxu0 0.0
      %852 = vmatpush2.msra.mxu0 0.0
      %853 = vmatprep.subr.mxu0 0.0
      %854 = vmatpush2.msra.mxu0 0.0
      %855 = vmatprep.subr.mxu0 0.0
      %856 = vmatpush2.msra.mxu0 0.0
      %857 = vmatprep.subr.mxu0 0.0
      %858 = vmatpush2.msra.mxu0 0.0
      %859 = vmatprep.subr.mxu0 0.0
      %860 = vmatpush2.msra.mxu0 0.0
      %861 = vmatprep.subr.mxu0 0.0
      %862 = vmatpush2.msra.mxu0 0.0
      %863 = vmatprep.subr.mxu0 0.0
      %864 = vmatpush2.msra.mxu0 0.0
      %865 = vmatprep.subr.mxu0 0.0
      %866 = vmatpush2.msra.mxu0 0.0
      %867 = vmatprep.subr.mxu0 0.0
      %868 = vmatpush2.msra.mxu0 0.0
      %869 = vmatprep.subr.mxu0 0.0
      %870 = vmatpush2.msra.mxu0 0.0
      %871 = vmatprep.subr.mxu0 0.0
      %872 = vmatpush2.msra.mxu0 0.0
      %873 = vmatprep.subr.mxu0 0.0
      %874 = vmatpush2.msra.mxu0 0.0
      %875 = vmatprep.subr.mxu0 0.0
      %876 = vmatpush2.msra.mxu0 0.0
      %877 = vmatprep.subr.mxu0 0.0
      %878 = vmatpush2.msra.mxu0 0.0
      %879 = vmatprep.subr.mxu0 0.0
      %880 = vmatpush2.msra.mxu0 0.0
      %881 = vmatprep.mubr.f32.mxu0 0.0
      %882 = vmatmul.mubr.f32.gmra.mxu0 %v814
      %v883 = vpop.f32.mrf.mxu0
      %v884 = vadd.f32 %v427, %v883
      %v885 = vpop.f32.mrf.mxu0
      %886 = vdwg.mxu0
      %s887 = scalar_lea.vmem [#allocation3], 40
      %v888 = vld [vmem:[%s887] sm:$0xff]
      %v889 = vadd.f32 %v888, %v884
      %v890 = vmax.f32 %v889, 0.0
      %v891 = vadd.f32 %v890, %v884
      %v892 = vmax.f32 %v891, 0.0
      %s893 = scalar_lea.vmem %s253, 40
      %894 = vst [vmem:[%s893] sm:$0xff] %v892
      %895 = vmatprep.subr.mxu0 0.0
      %896 = vmatpush1.msra.mxu0 %v420
      %897 = vmatprep.subr.mxu0 0.0
      %898 = vmatpush1.msra.mxu0 %v419
      %899 = vmatprep.subr.mxu0 0.0
      %900 = vmatpush1.msra.mxu0 %v418
      %901 = vmatprep.subr.mxu0 0.0
      %902 = vmatpush1.msra.mxu0 %v417
      %903 = vmatprep.subr.mxu0 0.0
      %904 = vmatpush1.msra.mxu0 %v416
      %905 = vmatprep.subr.mxu0 0.0
      %906 = vmatpush1.msra.mxu0 %v415
      %907 = vmatprep.subr.mxu0 0.0
      %908 = vmatpush1.msra.mxu0 %v414
      %909 = vmatprep.subr.mxu0 0.0
      %910 = vmatpush1.msra.mxu0 %v413
      %911 = vmatprep.subr.mxu0 0.0
      %912 = vmatpush1.msra.mxu0 %v412
      %913 = vmatprep.subr.mxu0 0.0
      %914 = vmatpush1.msra.mxu0 %v411
      %915 = vmatprep.subr.mxu0 0.0
      %916 = vmatpush1.msra.mxu0 %v410
      %917 = vmatprep.subr.mxu0 0.0
      %918 = vmatpush1.msra.mxu0 %v409
      %919 = vmatprep.subr.mxu0 0.0
      %920 = vmatpush1.msra.mxu0 %v408
      %921 = vmatprep.subr.mxu0 0.0
      %922 = vmatpush1.msra.mxu0 %v407
      %923 = vmatprep.subr.mxu0 0.0
      %924 = vmatpush1.msra.mxu0 %v406
      %925 = vmatprep.subr.mxu0 0.0
      %926 = vmatpush1.msra.mxu0 %v405
      %927 = vmatprep.subr.mxu0 0.0
      %928 = vmatpush2.msra.mxu0 0.0
      %929 = vmatprep.subr.mxu0 0.0
      %930 = vmatpush2.msra.mxu0 0.0
      %931 = vmatprep.subr.mxu0 0.0
      %932 = vmatpush2.msra.mxu0 0.0
      %933 = vmatprep.subr.mxu0 0.0
      %934 = vmatpush2.msra.mxu0 0.0
      %935 = vmatprep.subr.mxu0 0.0
      %936 = vmatpush2.msra.mxu0 0.0
      %937 = vmatprep.subr.mxu0 0.0
      %938 = vmatpush2.msra.mxu0 0.0
      %939 = vmatprep.subr.mxu0 0.0
      %940 = vmatpush2.msra.mxu0 0.0
      %941 = vmatprep.subr.mxu0 0.0
      %942 = vmatpush2.msra.mxu0 0.0
      %943 = vmatprep.subr.mxu0 0.0
      %944 = vmatpush2.msra.mxu0 0.0
      %945 = vmatprep.subr.mxu0 0.0
      %946 = vmatpush2.msra.mxu0 0.0
      %947 = vmatprep.subr.mxu0 0.0
      %948 = vmatpush2.msra.mxu0 0.0
      %949 = vmatprep.subr.mxu0 0.0
      %950 = vmatpush2.msra.mxu0 0.0
      %951 = vmatprep.subr.mxu0 0.0
      %952 = vmatpush2.msra.mxu0 0.0
      %953 = vmatprep.subr.mxu0 0.0
      %954 = vmatpush2.msra.mxu0 0.0
      %955 = vmatprep.subr.mxu0 0.0
      %956 = vmatpush2.msra.mxu0 0.0
      %957 = vmatprep.subr.mxu0 0.0
      %958 = vmatpush2.msra.mxu0 0.0
      %959 = vmatprep.mubr.f32.mxu0 0.0
      %960 = vmatmul.mubr.f32.gmra.mxu0 %v892
      %v961 = vpop.f32.mrf.mxu0
      %v962 = vadd.f32 %v427, %v961
      %v963 = vpop.f32.mrf.mxu0
      %964 = vdwg.mxu0
      %s965 = scalar_lea.vmem [#allocation3], 48
      %v966 = vld [vmem:[%s965] sm:$0xff]
      %v967 = vadd.f32 %v966, %v962
      %v968 = vmax.f32 %v967, 0.0
      %v969 = vadd.f32 %v968, %v962
      %v970 = vmax.f32 %v969, 0.0
      %s971 = scalar_lea.vmem %s253, 48
      %972 = vst [vmem:[%s971] sm:$0xff] %v970
      %973 = vmatprep.subr.mxu0 0.0
      %974 = vmatpush1.msra.mxu0 %v420
      %975 = vmatprep.subr.mxu0 0.0
      %976 = vmatpush1.msra.mxu0 %v419
      %977 = vmatprep.subr.mxu0 0.0
      %978 = vmatpush1.msra.mxu0 %v418
      %979 = vmatprep.subr.mxu0 0.0
      %980 = vmatpush1.msra.mxu0 %v417
      %981 = vmatprep.subr.mxu0 0.0
      %982 = vmatpush1.msra.mxu0 %v416
      %983 = vmatprep.subr.mxu0 0.0
      %984 = vmatpush1.msra.mxu0 %v415
      %985 = vmatprep.subr.mxu0 0.0
      %986 = vmatpush1.msra.mxu0 %v414
      %987 = vmatprep.subr.mxu0 0.0
      %988 = vmatpush1.msra.mxu0 %v413
      %989 = vmatprep.subr.mxu0 0.0
      %990 = vmatpush1.msra.mxu0 %v412
      %991 = vmatprep.subr.mxu0 0.0
      %992 = vmatpush1.msra.mxu0 %v411
      %993 = vmatprep.subr.mxu0 0.0
      %994 = vmatpush1.msra.mxu0 %v410
      %995 = vmatprep.subr.mxu0 0.0
      %996 = vmatpush1.msra.mxu0 %v409
      %997 = vmatprep.subr.mxu0 0.0
      %998 = vmatpush1.msra.mxu0 %v408
      %999 = vmatprep.subr.mxu0 0.0
      %1000 = vmatpush1.msra.mxu0 %v407
      %1001 = vmatprep.subr.mxu0 0.0
      %1002 = vmatpush1.msra.mxu0 %v406
      %1003 = vmatprep.subr.mxu0 0.0
      %1004 = vmatpush1.msra.mxu0 %v405
      %1005 = vmatprep.subr.mxu0 0.0
      %1006 = vmatpush2.msra.mxu0 0.0
      %1007 = vmatprep.subr.mxu0 0.0
      %1008 = vmatpush2.msra.mxu0 0.0
      %1009 = vmatprep.subr.mxu0 0.0
      %1010 = vmatpush2.msra.mxu0 0.0
      %1011 = vmatprep.subr.mxu0 0.0
      %1012 = vmatpush2.msra.mxu0 0.0
      %1013 = vmatprep.subr.mxu0 0.0
      %1014 = vmatpush2.msra.mxu0 0.0
      %1015 = vmatprep.subr.mxu0 0.0
      %1016 = vmatpush2.msra.mxu0 0.0
      %1017 = vmatprep.subr.mxu0 0.0
      %1018 = vmatpush2.msra.mxu0 0.0
      %1019 = vmatprep.subr.mxu0 0.0
      %1020 = vmatpush2.msra.mxu0 0.0
      %1021 = vmatprep.subr.mxu0 0.0
      %1022 = vmatpush2.msra.mxu0 0.0
      %1023 = vmatprep.subr.mxu0 0.0
      %1024 = vmatpush2.msra.mxu0 0.0
      %1025 = vmatprep.subr.mxu0 0.0
      %1026 = vmatpush2.msra.mxu0 0.0
      %1027 = vmatprep.subr.mxu0 0.0
      %1028 = vmatpush2.msra.mxu0 0.0
      %1029 = vmatprep.subr.mxu0 0.0
      %1030 = vmatpush2.msra.mxu0 0.0
      %1031 = vmatprep.subr.mxu0 0.0
      %1032 = vmatpush2.msra.mxu0 0.0
      %1033 = vmatprep.subr.mxu0 0.0
      %1034 = vmatpush2.msra.mxu0 0.0
      %1035 = vmatprep.subr.mxu0 0.0
      %1036 = vmatpush2.msra.mxu0 0.0
      %1037 = vmatprep.mubr.f32.mxu0 0.0
      %1038 = vmatmul.mubr.f32.gmra.mxu0 %v970
      %v1039 = vpop.f32.mrf.mxu0
      %v1040 = vadd.f32 %v427, %v1039
      %v1041 = vpop.f32.mrf.mxu0
      %1042 = vdwg.mxu0
      %s1043 = scalar_lea.vmem [#allocation3], 56
      %v1044 = vld [vmem:[%s1043] sm:$0xff]
      %v1045 = vadd.f32 %v1044, %v1040
      %v1046 = vmax.f32 %v1045, 0.0
      %v1047 = vadd.f32 %v1046, %v1040
      %v1048 = vmax.f32 %v1047, 0.0
      %s1049 = scalar_lea.vmem %s253, 56
      %1050 = vst [vmem:[%s1049] sm:$0xff] %v1048
      %1051 = vst [vmem:[#allocation2] sm:$0xff] %v1048
      %s1052 = smul.u32 8, %s17
      %p1053 = scmp.lt.s32.totalorder %s1052, 15
      %s1054 = scalar_select %p1053, %s1052, 15
      %s1055 = smul.addr %s1054, 8
      %s1056 = scalar_lea.vmem %s6, %s1055
      // Predicated region
      $region49: #{custom_rnn_sequence.1} parent=43 // pred_check
        %p1057 = pneg %p166
      $region50: #{custom_rnn_sequence.1} parent=43 // pred_check_branch
        %1059 = sbr.rel (%p1057) target = $region52
      $region51: #{custom_rnn_sequence.1} parent=43 // pred_region
        %s1060 = smul.u32 8, %s17
      $region52: #{custom_rnn_sequence.1} parent=43 // pred_fallthru
        _
    $region44: #{custom_rnn_sequence.1} parent=5 // pred_fallthru
      _
    %p1061 = scmp.le.s32.totalorder 2, %s12
    // Predicated region
    $region53: #{custom_rnn_sequence.1} parent=5 // pred_check
      %p1062 = pneg %p1061
    $region54: #{custom_rnn_sequence.1} parent=5 // pred_check_branch
      %1064 = sbr.rel (%p1062) target = $region56
    $region55: #{custom_rnn_sequence.1} parent=5 // pred_region
      %s1065 = ssub.s32 %s12, 2
      // Predicated region
      $region57: #{custom_rnn_sequence.1} parent=55 // pred_check
        %p1066 = pneg %p172
      $region58: #{custom_rnn_sequence.1} parent=55 // pred_check_branch
        %1068 = sbr.rel (%p1066) target = $region60
      $region59: #{custom_rnn_sequence.1} parent=55 // pred_region
        %s1069 = smul.u32 8, %s18
        %p1070 = scmp.lt.s32.totalorder %s1069, 15
        %s1071 = scalar_select %p1070, %s1069, 15
        %s1072 = smul.addr %s1071, 8
        %s1073 = scalar_lea.vmem %s6, %s1072
      $region60: #{custom_rnn_sequence.1} parent=55 // pred_fallthru
        _
    $region56: #{custom_rnn_sequence.1} parent=5 // pred_fallthru
      _
  $region6: #{custom_rnn_sequence.1} parent=0 // loop_footer
    %s16 = sadd.s32 1, %s12
  $region7: #{custom_rnn_sequence.1} parent=0 // loop_footer_branch
    %11 = sbr.rel target = $region3
  $region8: #{custom_rnn_sequence.1} parent=0 // loop_exit
    _

</llo_original>
